<compile_context>
chip_gen: v7x
topology: tpu7x:2x2x1
jax: 0.10.0
libtpu: 0.0.40
codegen_flags: <defaults>
</compile_context>

<pallas_src>
import functools

import jax
import jax.numpy as jnp
from jax.experimental import pallas as pl
from jax.experimental.pallas import tpu as pltpu

_LANE = 128
_MAX_TILE_ROWS = 2048  # (2048,128) f32 = 1 MiB per buffer


def _make_binary_acc_kernel(th_logits: float, th_label: float,
                            n_valid: int, tile_rows: int, grid_steps: int):
    # Plain Python scalars -> compile-time constants inside the kernel.
    th_l = float(th_logits)
    th_t = float(th_label)
    inv_n = 1.0 / float(n_valid)

    covered = grid_steps * tile_rows * _LANE
    needs_mask = covered != n_valid
    # Number of real (unpadded / in-bounds) elements inside the LAST block.
    last_valid = n_valid - (grid_steps - 1) * tile_rows * _LANE

    def _fold(match_f32):
        # Fold a (tile_rows, 128) tile into the (1, 128) accumulator row.
        return jnp.sum(match_f32, axis=0, keepdims=True)

    def kernel(x_ref, t_ref, o_ref, acc_ref):
        i = pl.program_id(0)
        last = pl.num_programs(0) - 1

        @pl.when(i == 0)
        def _():
            acc_ref[...] = jnp.zeros_like(acc_ref)

        # Threshold compare in the input's native dtype (VPU only).
        match = (x_ref[...] > th_l) == (t_ref[...] > th_t)

        if needs_mask:
            # Steady-state blocks: no masking work at all.
            @pl.when(i < last)
            def _():
                acc_ref[...] += _fold(match.astype(jnp.float32))

            # Only the final block can contain column padding and/or the
            # partially out-of-bounds tail rows of the last grid step.
            @pl.when(i == last)
            def _():
                row_ids = jax.lax.broadcasted_iota(jnp.int32, (tile_rows, _LANE), 0)
                col_ids = jax.lax.broadcasted_iota(jnp.int32, (tile_rows, _LANE), 1)
                valid = (row_ids * _LANE + col_ids) < last_valid
                acc_ref[...] += _fold((match & valid).astype(jnp.float32))
        else:
            acc_ref[...] += _fold(match.astype(jnp.float32))

        @pl.when(i == last)
        def _():
            # Single cross-lane reduction + scale, once per call.
            o_ref[0] = jnp.sum(acc_ref[...]) * inv_n

    return kernel


@functools.partial(jax.jit, static_argnames=("th_logits", "th_label"))
def binary_acc(inputs, targets, th_logits: float = 0.0, th_label: float = 0.5):
    assert inputs.shape == targets.shape, "inputs/targets must have equal shapes"
    n_valid = int(inputs.size)
    assert n_valid > 0, "mean over zero elements is undefined"

    # Flatten only; keep native dtypes (no HBM-doubling upcast/concat).
    x = inputs.reshape(-1)
    t = targets.reshape(-1)

    # Minimal column padding so the flat vector reshapes to (rows, 128).
    # Padded values are irrelevant: the kernel masks them out by index.
    pad = (-n_valid) % _LANE
    if pad:
        x = jnp.pad(x, (0, pad))
        t = jnp.pad(t, (0, pad))
    rows = (n_valid + pad) // _LANE

    x2 = x.reshape(rows, _LANE)
    t2 = t.reshape(rows, _LANE)

    # Small input: one block equal to the full array dims (grid=(1,)),
    # otherwise large aligned tiles.
    tile_rows = rows if rows <= _MAX_TILE_ROWS else _MAX_TILE_ROWS
    grid_steps = pl.cdiv(rows, tile_rows)

    kernel = _make_binary_acc_kernel(th_logits, th_label, n_valid,
                                     tile_rows, grid_steps)

    out = pl.pallas_call(
        kernel,
        out_shape=jax.ShapeDtypeStruct((1,), jnp.float32),
        grid_spec=pltpu.PrefetchScalarGridSpec(
            num_scalar_prefetch=0,
            grid=(grid_steps,),
            in_specs=[
                pl.BlockSpec((tile_rows, _LANE), lambda i: (i, 0)),
                pl.BlockSpec((tile_rows, _LANE), lambda i: (i, 0)),
            ],
            out_specs=pl.BlockSpec(memory_space=pltpu.SMEM),
            scratch_shapes=[pltpu.VMEM((1, _LANE), jnp.float32)],
        ),
        compiler_params=pltpu.CompilerParams(
            dimension_semantics=("arbitrary",),
        ),
    )(x2, t2)

    return out[0]


def binary_acc_ref(inputs, targets, th_logits=0.0, th_label=0.5):
    return jnp.mean(
        ((inputs > th_logits) == (targets > th_label)).astype(jnp.float32)
    )


if __name__ == "__main__":
    key = jax.random.PRNGKey(0)
    k1, k2, k3, k4 = jax.random.split(key, 4)

    # "logits" and binary-ish labels, NCHW [2, 4, 16, 16]
    inputs = jax.random.normal(k1, (2, 4, 16, 16), dtype=jnp.float32)
    targets = jax.random.bernoulli(k2, p=0.5, shape=(2, 4, 16, 16)).astype(
        jnp.float32
    )

    acc = binary_acc(inputs, targets)
    acc = jax.block_until_ready(acc)
    ref = binary_acc_ref(inputs, targets)
    assert jnp.allclose(acc, ref, atol=1e-6, rtol=1e-6), (acc, ref)

    # Ragged shape (exercises the masked-tail path: 105 elements, not /128).
    ri = jax.random.normal(k3, (3, 5, 7), dtype=jnp.float32)
    rt = jax.random.bernoulli(k4, p=0.5, shape=(3, 5, 7)).astype(jnp.float32)
    acc_r = jax.block_until_ready(binary_acc(ri, rt))
    ref_r = binary_acc_ref(ri, rt)
    assert jnp.allclose(acc_r, ref_r, atol=1e-6, rtol=1e-6), (acc_r, ref_r)

    print("KERNEL_OK")
</pallas_src>

<mosaic_0001>
module attributes {stable_mosaic.version = 11 : i64} {
  func.func @kernel(%arg0: i32, %arg1: memref<16x128xf32, #tpu.memory_space<vmem>>, %arg2: memref<16x128xf32, #tpu.memory_space<vmem>>, %arg3: memref<1xf32, #tpu.memory_space<smem>>, %arg4: memref<1x128xf32, #tpu.memory_space<vmem>>) attributes {dimension_semantics = [#tpu.dimension_semantics<arbitrary>], iteration_bounds = array<i64: 1>, scalar_prefetch = 0 : i64, scratch_operands = 1 : i64, tpu.core_type = #tpu.core_type<tc>, window_params = [{transform_indices = @transform_0, window_bounds = array<i64: 16, 128>}, {transform_indices = @transform_1, window_bounds = array<i64: 16, 128>}, {transform_indices = @transform_2, window_bounds = array<i64: 1>}]} {
    %c0_i32 = arith.constant 0 : i32
    %0 = arith.cmpi eq, %arg0, %c0_i32 : i32
    %1 = arith.extui %0 : i1 to i32
    %c0_i32_0 = arith.constant 0 : i32
    %2 = arith.cmpi ne, %1, %c0_i32_0 : i32
    scf.if %2 {
      %cst_13 = arith.constant 0.000000e+00 : f32
      %21 = vector.broadcast %cst_13 : f32 to vector<1x128xf32>
      %c0_14 = arith.constant 0 : index
      %c0_15 = arith.constant 0 : index
      %22 = vector.load %arg4[%c0_14, %c0_15] : memref<1x128xf32, #tpu.memory_space<vmem>>, vector<1x128xf32>
      tpu.vector_store %arg4[%c0_14, %c0_15], %21 {strides = array<i32>} : memref<1x128xf32, #tpu.memory_space<vmem>>, vector<1x128xf32>,
    } else {
    }
    %c0 = arith.constant 0 : index
    %c0_1 = arith.constant 0 : index
    %3 = vector.load %arg1[%c0, %c0_1] : memref<16x128xf32, #tpu.memory_space<vmem>>, vector<16x128xf32>
    %cst = arith.constant 0.000000e+00 : f32
    %4 = vector.broadcast %cst : f32 to vector<16x128xf32>
    %5 = arith.cmpf ogt, %3, %4 : vector<16x128xf32>
    %c0_2 = arith.constant 0 : index
    %c0_3 = arith.constant 0 : index
    %6 = vector.load %arg2[%c0_2, %c0_3] : memref<16x128xf32, #tpu.memory_space<vmem>>, vector<16x128xf32>
    %cst_4 = arith.constant 5.000000e-01 : f32
    %7 = vector.broadcast %cst_4 : f32 to vector<16x128xf32>
    %8 = arith.cmpf ogt, %6, %7 : vector<16x128xf32>
    %9 = arith.xori %5, %8 : vector<16x128xi1>
    %cst_5 = arith.constant dense<true> : vector<16x128xi1>
    %10 = arith.xori %9, %cst_5 : vector<16x128xi1>
    %c0_6 = arith.constant 0 : index
    %c0_7 = arith.constant 0 : index
    %11 = vector.load %arg4[%c0_6, %c0_7] : memref<1x128xf32, #tpu.memory_space<vmem>>, vector<1x128xf32>
    %12 = arith.extui %10 : vector<16x128xi1> to vector<16x128xi32>
    %13 = arith.sitofp %12 : vector<16x128xi32> to vector<16x128xf32>
    %cst_8 = arith.constant dense<0.000000e+00> : vector<128xf32>
    %14 = vector.multi_reduction <add>, %13, %cst_8 [0] : vector<16x128xf32> to vector<128xf32>
    %15 = vector.shape_cast %14 : vector<128xf32> to vector<1x128xf32>
    %16 = arith.addf %11, %15 : vector<1x128xf32>
    %c0_9 = arith.constant 0 : index
    %c0_10 = arith.constant 0 : index
    %17 = vector.load %arg4[%c0_9, %c0_10] : memref<1x128xf32, #tpu.memory_space<vmem>>, vector<1x128xf32>
    tpu.vector_store %arg4[%c0_9, %c0_10], %16 {strides = array<i32>} : memref<1x128xf32, #tpu.memory_space<vmem>>, vector<1x128xf32>,
    %c0_i32_11 = arith.constant 0 : i32
    %18 = arith.cmpi eq, %arg0, %c0_i32_11 : i32
    %19 = arith.extui %18 : i1 to i32
    %c0_i32_12 = arith.constant 0 : i32
    %20 = arith.cmpi ne, %19, %c0_i32_12 : i32
    scf.if %20 {
      %c0_13 = arith.constant 0 : index
      %c0_14 = arith.constant 0 : index
      %21 = vector.load %arg4[%c0_13, %c0_14] : memref<1x128xf32, #tpu.memory_space<vmem>>, vector<1x128xf32>
      %22 = vector.shape_cast %21 : vector<1x128xf32> to vector<1x1x128xf32>
      %cst_15 = arith.constant dense<0.000000e+00> : vector<1xf32>
      %23 = vector.multi_reduction <add>, %22, %cst_15 [1, 2] : vector<1x1x128xf32> to vector<1xf32>
      %24 = vector.shape_cast %23 : vector<1xf32> to vector<1x1x1xf32>
      %25 = vector.extract %24[0, 0, 0] : f32 from vector<1x1x1xf32>
      %cst_16 = arith.constant 4.8828125E-4 : f32
      %26 = arith.mulf %25, %cst_16 : f32
      %c0_17 = arith.constant 0 : index
      %27 = memref.load %arg3[%c0_17] : memref<1xf32, #tpu.memory_space<smem>>
      memref.store %26, %arg3[%c0_17] : memref<1xf32, #tpu.memory_space<smem>>
    } else {
    }
    return
  }
  func.func @transform_0(%arg0: i32) -> (i32, i32) {
    %c0_i32 = arith.constant 0 : i32
    %c0_i32_0 = arith.constant 0 : i32
    return %arg0, %c0_i32 : i32, i32
  }
  func.func @transform_1(%arg0: i32) -> (i32, i32) {
    %c0_i32 = arith.constant 0 : i32
    %c0_i32_0 = arith.constant 0 : i32
    return %arg0, %c0_i32 : i32, i32
  }
  func.func @transform_2(%arg0: i32) -> i32 {
    %c0_i32 = arith.constant 0 : i32
    %c0_i32_0 = arith.constant 0 : i32
    return %c0_i32 : i32
  }
}

</mosaic_0001>

<llo_original>
// kernel: binary_acc.1
$region0: #{binary_acc.1}
  #allocation0 [shape = 'u32[]', space=smem, size = 0x4, offset = 0x4, fixed_abs, tag = 'smem constant byte address 0x4 - core index']
  #allocation1 [shape = 'u32[144,128]{1,0:T(1,128)}', space=vmem, size = 0x12000, scoped, tag = 'internal scratch']
  #allocation2 [shape = 'f32[1,128]{1,0:T(1,128)}', space=vmem, size = 0x200, scoped, tag = 'scratch operand']
  %s0 = inlined_call_operand.vmem [shape: f32[16,128], index: 0, kind: input, shape index: {}]
  %s1 = inlined_call_operand.vmem [shape: f32[16,128], index: 1, kind: input, shape index: {}]
  %s2 = inlined_call_operand.hbm [shape: f32[1], index: 2, kind: output, shape index: {}]
  %s3 = sld [smem:[#allocation0]]
  $region26: #{binary_acc.1} parent=0
    _
  %s5 = ssub.s32 1, %s3
  %s6 = scalar_select 0, %s5, %s3
  $region1: #{binary_acc.1} parent=0
    #allocation3 [shape = 'u8[512]{0}', space=smem, size = 0x200, scoped, tag = 'output window, operand 0, single buffered']
    #allocation4 [shape = 's32[1]{0}', space=sflag, size = 0x4, scoped, tag = 'scoped memory for binary_acc.1']
    %7 = vsyncpa [#allocation4], 0
    // Predicated region
    $region2: #{binary_acc.1} parent=1 // pred_check
      _
    $region3: #{binary_acc.1} parent=1 // pred_check_branch
      %9 = sbr.rel (0) target = $region5
    $region4: #{binary_acc.1} parent=1 // pred_region
      _
    $region5: #{binary_acc.1} parent=1 // pred_fallthru
      _
    // Predicated region
    $region6: #{binary_acc.1} parent=1 // pred_check
      _
    $region7: #{binary_acc.1} parent=1 // pred_check_branch
      %11 = sbr.rel (0) target = $region9
    $region8: #{binary_acc.1} parent=1 // pred_region
      _
    $region9: #{binary_acc.1} parent=1 // pred_fallthru
      _
    %p12 = scmp.eq.s32.totalorder 0, 0
    // Predicated region
    $region10: #{binary_acc.1} parent=1 // pred_check
      %p13 = pneg %p12
    $region11: #{binary_acc.1} parent=1 // pred_check_branch
      %15 = sbr.rel (%p13) target = $region13
    $region12: #{binary_acc.1} parent=1 // pred_region
      %16 = vst [vmem:[#allocation2] sm:$0x1] 0.0
    $region13: #{binary_acc.1} parent=1 // pred_fallthru
      _
    %v17 = vld [vmem:[%s0] sm:$0xff]
    %v18 = vld [vmem:[%s0 + $0x8] sm:$0xff]
    %vm19 = vcmp.gt.f32.partialorder %v17, 0.0
    %vm20 = vcmp.gt.f32.partialorder %v18, 0.0
    %v21 = vld [vmem:[%s1] sm:$0xff]
    %v22 = vld [vmem:[%s1 + $0x8] sm:$0xff]
    %vm23 = vcmp.gt.f32.partialorder %v21, 0.5
    %vm24 = vcmp.gt.f32.partialorder %v22, 0.5
    %vm25 = vmxor %vm19, %vm23
    %vm26 = vmxor %vm20, %vm24
    %vm27 = vmxor %vm25, 1
    %vm28 = vmxor %vm26, 1
    %v29 = vld [vmem:[#allocation2] sm:$0x1]
    %v30 = vsel %vm27, 1, 0
    %v31 = vsel %vm28, 1, 0
    %v32 = vcvt.s32.f32 %v30
    %v33 = vcvt.s32.f32 %v31
    %v34 = vadd.f32 %v32, %v33
    %v35 = vrot.slane %v34, 4
    %v36 = vadd.f32 %v34, %v35
    %v37 = vrot.slane %v36, 2
    %v38 = vadd.f32 %v36, %v37
    %v39 = vrot.slane %v38, 1
    %v40 = vadd.f32 %v38, %v39
    %v41 = vadd.f32 %v29, %v40
    %42 = vst [vmem:[#allocation2] sm:$0x1] %v41
    // Predicated region
    $region14: #{binary_acc.1} parent=1 // pred_check
      %p43 = pneg %p12
    $region15: #{binary_acc.1} parent=1 // pred_check_branch
      %45 = sbr.rel (%p43) target = $region17
    $region16: #{binary_acc.1} parent=1 // pred_region
      %v46 = vld [vmem:[#allocation2] sm:$0x1]
      %vm47 = vcmask 1040384
      %v48 = vsel %vm47, %v46, 0.0
      %49 = vadd.xlane.f32.xlu0 %v48
      %v50 = vpop.xlane.xlu0 %49
      %v51 = vrot.slane %v50, 4
      %v52 = vadd.f32 %v50, %v51
      %v53 = vrot.slane %v52, 2
      %v54 = vadd.f32 %v52, %v53
      %v55 = vrot.slane %v54, 1
      %v56 = vadd.f32 %v54, %v55
      %s57 = vtos %v56
      %s58 = smul.f32 %s57, 0.00048828125
      %s59 = scalar_lea.smem [#allocation3], 0
      %60 = sst [smem:[%s59]] %s58
    $region17: #{binary_acc.1} parent=1 // pred_fallthru
      _
    // Predicated region
    $region18: #{binary_acc.1} parent=1 // pred_check
      _
    $region19: #{binary_acc.1} parent=1 // pred_check_branch
      %62 = sbr.rel (0) target = $region21
    $region20: #{binary_acc.1} parent=1 // pred_region
      %s64 = ssub.s32 16, 16
      %65 = vsyncadd [#allocation4], %s64
      %68 = dma.smem_to_hbm [#allocation3], 16, %s2, [#allocation4]
    $region21: #{binary_acc.1} parent=1 // pred_fallthru
      _
    // Predicated region
    $region22: #{binary_acc.1} parent=1 // pred_check
      _
    $region23: #{binary_acc.1} parent=1 // pred_check_branch
      %70 = sbr.rel (0) target = $region25
    $region24: #{binary_acc.1} parent=1 // pred_region
      %71 = dma.done [#allocation4], 16
    $region25: #{binary_acc.1} parent=1 // pred_fallthru
      _
    %72 = sfence
    %73 = vsyncpa [#allocation4], 1

</llo_original>
